<compile_context>
chip_gen: v6e
topology: v6e:2x2x1
jax: 0.10.0
libtpu: 0.0.40
codegen_flags: <defaults>
</compile_context>

<pallas_src>
import functools
import math

import jax
import jax.numpy as jnp
from jax.experimental import pallas as pl
from jax.experimental.pallas import tpu as pltpu


# =============================================================================
# Sinusoidal positional-encoding table (plain JAX glue; mirrors the PyTorch
# registered buffer `pe`).  Returned as (max_len, d_model).
# =============================================================================
def make_pe_table(d_model: int, max_len: int) -> jnp.ndarray:
    position = jnp.arange(max_len, dtype=jnp.float32)[:, None]              # (max_len, 1)
    div_term = jnp.exp(jnp.arange(0, d_model, 2, dtype=jnp.float32)
                       * (-math.log(10000.0) / d_model))                    # (d_model/2,)
    pe = jnp.zeros((max_len, d_model), dtype=jnp.float32)
    pe = pe.at[:, 0::2].set(jnp.sin(position * div_term))
    pe = pe.at[:, 1::2].set(jnp.cos(position * div_term))
    return pe                                                                # (max_len, d_model)


# =============================================================================
# Kernels
# =============================================================================
def _add_pe_kernel(x_ref, pe_ref, o_ref):
    # Eval-mode forward (dropout is identity).  Pure memory-bound add, done in
    # the input dtype (bf16 stays bf16 on v6e/v7x).
    o_ref[...] = (x_ref[...] + pe_ref[...]).astype(o_ref.dtype)


def _add_pe_dropout_tpu_kernel(seed_ref, x_ref, pe_ref, o_ref, *,
                               keep_prob, grid_rank):
    """Training-mode forward using the hardware PRNG.

    The PRNG is re-seeded once per grid tile with (user seed, linearised tile
    id), so every tile draws an independent stream; total cost per element is
    one AND, one compare, one select and one multiply on top of the add.
    """
    tile_id = pl.program_id(0)
    for ax in range(1, grid_rank):
        tile_id = tile_id * pl.num_programs(ax) + pl.program_id(ax)
    pltpu.prng_seed(seed_ref[0], tile_id)

    y = x_ref[...] + pe_ref[...]

    bits = pltpu.prng_random_bits(o_ref.shape)
    if bits.dtype.name != "int32":
        bits = pltpu.bitcast(bits, jnp.int32)
    r = bits & jnp.int32(0x7FFFFFFF)                       # uniform in [0, 2^31)
    thresh = jnp.int32(min(int(round(keep_prob * (1 << 31))), (1 << 31) - 1))
    keep = r < thresh

    inv = jnp.asarray(1.0 / keep_prob, dtype=y.dtype)
    o_ref[...] = jnp.where(keep, y * inv, jnp.zeros_like(y)).astype(o_ref.dtype)


# ---- Fallback (non-TPU backend only): stateless counter-based int32 hash ----
def _mix32(x):
    x = x ^ ((x >> 16) & jnp.int32(0xFFFF))
    x = x * jnp.int32(0x7FEB352D)
    x = x ^ ((x >> 15) & jnp.int32(0x1FFFF))
    x = x * jnp.int32(-2073319797)          # 0x846CA68B as int32
    x = x ^ ((x >> 16) & jnp.int32(0xFFFF))
    return x


def _add_pe_dropout_hash_kernel(seed_ref, x_ref, pe_ref, o_ref, *,
                                keep_prob, n_cols, origin_fn):
    y = (x_ref[...] + pe_ref[...]).astype(jnp.float32)
    rows, cols = o_ref.shape
    row0, col0 = origin_fn()
    base = row0 * jnp.int32(n_cols) + col0                 # scalar, hoisted
    ri = jax.lax.broadcasted_iota(jnp.int32, (rows, cols), 0)
    ci = jax.lax.broadcasted_iota(jnp.int32, (rows, cols), 1)
    flat = base + ri * jnp.int32(n_cols) + ci
    h = _mix32(flat ^ _mix32(seed_ref[0]))
    r = h & jnp.int32(0x7FFFFFFF)
    thresh = jnp.int32(min(int(round(keep_prob * (1 << 31))), (1 << 31) - 1))
    keep = r < thresh
    o_ref[...] = jnp.where(keep, y * jnp.float32(1.0 / keep_prob),
                           jnp.float32(0.0)).astype(o_ref.dtype)


# =============================================================================
# Tile selection (budget-driven; cdiv grids, ragged last block allowed)
# =============================================================================
_TILE_BUDGET_BYTES = 4 * 1024 * 1024    # per pipeline buffer (x / pe / out each)
_VMEM_LIMIT_BYTES = 48 * 1024 * 1024    # < v7x's 64 MiB physical VMEM


def _sublane_multiple(dtype):
    # 8 rows for f32, 16 for bf16, 32 for int8/fp8 (native packed tile height).
    return max(8, 32 // max(1, jnp.dtype(dtype).itemsize))


def _choose_seq_tile(S, D, dtype, budget=_TILE_BUDGET_BYTES):
    """Sequence-tile rows for the (tS, D) block, multiple of the native sublane
    count; the grid uses cdiv so S need not be divisible."""
    sub = _sublane_multiple(dtype)
    itemsize = jnp.dtype(dtype).itemsize
    max_rows = max(sub, budget // max(1, D * itemsize))
    tS = min(S, max_rows)
    if tS >= sub:
        tS = (tS // sub) * sub
    else:
        tS = S                              # block == full dim is always legal
    return tS


def _choose_flat_tile(B, F, dtype, budget=_TILE_BUDGET_BYTES):
    """Lane-tile columns for the (B, tF) block, multiple of 128; cdiv grid."""
    itemsize = jnp.dtype(dtype).itemsize
    sub = _sublane_multiple(dtype)
    rows_padded = ((B + sub - 1) // sub) * sub    # sublane padding in VMEM
    max_cols = max(128, budget // max(1, rows_padded * itemsize))
    tF = min(F, max_cols)
    if tF >= 128:
        tF = (tF // 128) * 128
    else:
        tF = F                              # block == full dim is always legal
    return tF


# =============================================================================
# Forward wrapper
# =============================================================================
def positional_encoding(x, pe_2d, *, dropout_proba=0.1, training=False, seed=0):
    """dropout(x + pe[:S]).  x: (B, S, D); pe_2d: (max_len, D)."""
    B, S, D = x.shape
    assert pe_2d.shape[0] >= S and pe_2d.shape[1] == D
    if pe_2d.dtype != x.dtype:
        pe_2d = pe_2d.astype(x.dtype)       # normally pre-cast at module init

    use_3d = (D % 128 == 0)

    if use_3d:
        # Lane-dense already: tile the sequence axis; batch is the inner grid
        # axis so the PE block index is unchanged step-to-step (DMA elided).
        # The full (max_len, D) table is passed; only the first ceil(S/tS)
        # blocks are touched, so no per-call slice of PE is needed.
        tS = _choose_seq_tile(S, D, x.dtype)
        grid = (pl.cdiv(S, tS), B)
        x_spec = pl.BlockSpec((None, tS, D), lambda s, b, *_: (b, s, 0))
        pe_spec = pl.BlockSpec((tS, D), lambda s, b, *_: (s, 0))
        o_spec = pl.BlockSpec((None, tS, D), lambda s, b, *_: (b, s, 0))
        x_in, pe_in = x, pe_2d
        out_shape = jax.ShapeDtypeStruct((B, S, D), x.dtype)
        n_cols = D
        origin_fn = lambda: (pl.program_id(1) * S + pl.program_id(0) * tS, 0)
    else:
        # Small / unaligned d_model: flatten (S, D) -> S*D so the lane axis is
        # wide and stores are unmasked (tF multiple of 128 when tiled).
        # TODO(synk): when B < 8 AND the array is large enough to need tiling,
        # sublane utilisation is B/8; a row-flattened layout would fix it but
        # complicates the PE broadcast.
        F = S * D
        tF = _choose_flat_tile(B, F, x.dtype)
        grid = (pl.cdiv(F, tF),)
        x_spec = pl.BlockSpec((B, tF), lambda f, *_: (0, f))
        pe_spec = pl.BlockSpec((1, tF), lambda f, *_: (0, f))
        o_spec = pl.BlockSpec((B, tF), lambda f, *_: (0, f))
        x_in = x.reshape(B, F)
        pe_in = pe_2d[:S, :].reshape(1, F)
        out_shape = jax.ShapeDtypeStruct((B, F), x.dtype)
        n_cols = F
        origin_fn = lambda: (0, pl.program_id(0) * tF)

    compiler_params = pltpu.CompilerParams(
        dimension_semantics=("parallel",) * len(grid),
        vmem_limit_bytes=_VMEM_LIMIT_BYTES,
    )

    if (not training) or dropout_proba == 0.0:
        out = pl.pallas_call(
            _add_pe_kernel,
            out_shape=out_shape,
            grid_spec=pltpu.PrefetchScalarGridSpec(
                num_scalar_prefetch=0,
                grid=grid,
                in_specs=[x_spec, pe_spec],
                out_specs=o_spec,
            ),
            compiler_params=compiler_params,
        )(x_in, pe_in)
    else:
        keep_prob = 1.0 - float(dropout_proba)
        if jax.default_backend() == "tpu":
            kern = functools.partial(_add_pe_dropout_tpu_kernel,
                                     keep_prob=keep_prob, grid_rank=len(grid))
        else:
            kern = functools.partial(_add_pe_dropout_hash_kernel,
                                     keep_prob=keep_prob, n_cols=n_cols,
                                     origin_fn=origin_fn)
        seed_arr = jnp.asarray([seed], dtype=jnp.int32)
        out = pl.pallas_call(
            kern,
            out_shape=out_shape,
            grid_spec=pltpu.PrefetchScalarGridSpec(
                num_scalar_prefetch=1,
                grid=grid,
                in_specs=[x_spec, pe_spec],
                out_specs=o_spec,
            ),
            compiler_params=compiler_params,
        )(seed_arr, x_in, pe_in)

    return out if use_3d else out.reshape(B, S, D)


class PallasPositionalEncoding:
    """Mirrors the PyTorch module: PE table built & dtype-cast once at init."""

    def __init__(self, d_model, dropout_proba=0.1, max_len=5000, dtype=jnp.float32):
        self.dropout_proba = float(dropout_proba)
        self.pe = make_pe_table(d_model, max_len).astype(dtype)   # (max_len, d_model)

    def __call__(self, x, *, training=False, seed=0):
        return positional_encoding(x, self.pe,
                                   dropout_proba=self.dropout_proba,
                                   training=training, seed=seed)


# =============================================================================
if __name__ == "__main__":
    key = jax.random.PRNGKey(0)
    k1, k2 = jax.random.split(key)
    keep_prob = 0.9

    # --- Case 1: module-sized demo (d_model=32 < 128) -> flattened lane-dense path.
    d_model, max_len, batch, seq = 32, 64, 2, 8
    module = PallasPositionalEncoding(d_model, dropout_proba=0.1, max_len=max_len)
    x = jax.random.normal(k1, (batch, seq, d_model), dtype=jnp.float32)
    ref = x + module.pe[None, :seq, :]

    out_eval = jax.block_until_ready(module(x, training=False))
    assert out_eval.shape == (batch, seq, d_model)
    assert jnp.allclose(out_eval, ref, atol=1e-6), "eval-mode mismatch (flat path)"

    out_train = jax.block_until_ready(module(x, training=True, seed=1234))
    assert out_train.shape == (batch, seq, d_model)
    assert bool(jnp.any(out_train != 0.0))
    kept = out_train != 0.0
    ok = jnp.where(kept, jnp.isclose(out_train, ref / keep_prob, rtol=1e-5, atol=1e-5), True)
    assert bool(jnp.all(ok)), "training-mode kept values mismatch (flat path)"

    # --- Case 2: lane-aligned d_model exercises the sequence-tiled 3-D path.
    d_model2, seq2 = 128, 16
    module2 = PallasPositionalEncoding(d_model2, dropout_proba=0.1, max_len=max_len)
    x2 = jax.random.normal(k2, (batch, seq2, d_model2), dtype=jnp.float32)
    ref2 = x2 + module2.pe[None, :seq2, :]

    out_eval2 = jax.block_until_ready(module2(x2, training=False))
    assert jnp.allclose(out_eval2, ref2, atol=1e-6), "eval-mode mismatch (3D path)"

    out_train2 = jax.block_until_ready(module2(x2, training=True, seed=7))
    kept2 = out_train2 != 0.0
    ok2 = jnp.where(kept2, jnp.isclose(out_train2, ref2 / keep_prob, rtol=1e-5, atol=1e-5), True)
    assert bool(jnp.all(ok2)), "training-mode kept values mismatch (3D path)"

    print("KERNEL_OK")
</pallas_src>

<mosaic_0001>
module attributes {stable_mosaic.version = 11 : i64} {
  func.func @_add_pe_kernel(%arg0: i32, %arg1: memref<2x256xf32, #tpu.memory_space<vmem>>, %arg2: memref<1x256xf32, #tpu.memory_space<vmem>>, %arg3: memref<2x256xf32, #tpu.memory_space<vmem>>) attributes {dimension_semantics = [#tpu.dimension_semantics<parallel>], iteration_bounds = array<i64: 1>, scalar_prefetch = 0 : i64, scratch_operands = 0 : i64, tpu.core_type = #tpu.core_type<tc>, window_params = [{transform_indices = @transform_0, window_bounds = array<i64: 2, 256>}, {transform_indices = @transform_1, window_bounds = array<i64: 1, 256>}, {transform_indices = @transform_2, window_bounds = array<i64: 2, 256>}]} {
    %c0 = arith.constant 0 : index
    %c0_0 = arith.constant 0 : index
    %0 = vector.load %arg1[%c0, %c0_0] : memref<2x256xf32, #tpu.memory_space<vmem>>, vector<2x256xf32>
    %c0_1 = arith.constant 0 : index
    %c0_2 = arith.constant 0 : index
    %1 = vector.load %arg2[%c0_1, %c0_2] : memref<1x256xf32, #tpu.memory_space<vmem>>, vector<1x256xf32>
    %2 = vector.broadcast %1 : vector<1x256xf32> to vector<2x256xf32>
    %3 = arith.addf %0, %2 : vector<2x256xf32>
    %c0_3 = arith.constant 0 : index
    %c0_4 = arith.constant 0 : index
    %4 = vector.load %arg3[%c0_3, %c0_4] : memref<2x256xf32, #tpu.memory_space<vmem>>, vector<2x256xf32>
    tpu.vector_store %arg3[%c0_3, %c0_4], %3 {strides = array<i32>} : memref<2x256xf32, #tpu.memory_space<vmem>>, vector<2x256xf32>,
    return
  }
  func.func @transform_0(%arg0: i32) -> (i32, i32) {
    %c0_i32 = arith.constant 0 : i32
    %c0_i32_0 = arith.constant 0 : i32
    return %c0_i32, %arg0 : i32, i32
  }
  func.func @transform_1(%arg0: i32) -> (i32, i32) {
    %c0_i32 = arith.constant 0 : i32
    %c0_i32_0 = arith.constant 0 : i32
    return %c0_i32, %arg0 : i32, i32
  }
  func.func @transform_2(%arg0: i32) -> (i32, i32) {
    %c0_i32 = arith.constant 0 : i32
    %c0_i32_0 = arith.constant 0 : i32
    return %c0_i32, %arg0 : i32, i32
  }
}

</mosaic_0001>

<llo_original>
// kernel: tpu_custom_call.1
$region0: #{tpu_custom_call.1}
  #allocation0 [shape = 'u32[]', space=smem, size = 0x4, offset = 0x4, fixed_abs, tag = 'smem constant byte address 0x4 - core index']
  #allocation1 [shape = 'u32[144,128]{1,0:T(1,128)}', space=vmem, size = 0x12000, scoped, tag = 'internal scratch']
  %s0 = inlined_call_operand.hbm [shape: f32[2,256], index: 0, kind: input, shape index: {}]
  %s1 = inlined_call_operand.hbm [shape: f32[1,256], index: 1, kind: input, shape index: {}]
  %s2 = inlined_call_operand.hbm [shape: f32[2,256], index: 2, kind: output, shape index: {}]
  %s3 = sld [smem:[#allocation0]]
  $region26: #{tpu_custom_call.1} parent=0
    _
  %s5 = ssub.s32 1, %s3
  %s6 = scalar_select 0, %s5, %s3
  $region1: #{tpu_custom_call.1} parent=0
    #allocation2 [shape = 'u8[2048]{0}', space=vmem, size = 0x800, scoped, tag = 'input window, operand 0, single buffered']
    #allocation3 [shape = 's32[1]{0}', space=sflag, size = 0x4, scoped, tag = 'scoped memory for tpu_custom_call.1']
    #allocation4 [shape = 's32[1]{0}', space=sflag, size = 0x4, scoped, tag = 'scoped memory for tpu_custom_call.1']
    #allocation5 [shape = 'u8[1024]{0}', space=vmem, size = 0x400, scoped, tag = 'input window, operand 1, single buffered']
    #allocation6 [shape = 's32[1]{0}', space=sflag, size = 0x4, scoped, tag = 'scoped memory for tpu_custom_call.1']
    #allocation7 [shape = 'u8[2048]{0}', space=vmem, size = 0x800, scoped, tag = 'output window, operand 0, single buffered']
    %7 = vsyncpa [#allocation3], 0
    %8 = vsyncpa [#allocation6], 0
    %9 = vsyncpa [#allocation4], 0
    // Predicated region
    $region2: #{tpu_custom_call.1} parent=1 // pred_check
      _
    $region3: #{tpu_custom_call.1} parent=1 // pred_check_branch
      %11 = sbr.rel (0) target = $region5
    $region4: #{tpu_custom_call.1} parent=1 // pred_region
      %s13 = ssub.s32 64, 64
      %14 = vsyncadd [#allocation3], %s13
      %s16 = sshll.u32 [#allocation2], 4
      %s17 = int_to_ptr.vmem [resolvable:$true] %s16
      %19 = dma.hbm_to_vmem [thread:$0]  %s0, 64, %s17, [#allocation3]
    $region5: #{tpu_custom_call.1} parent=1 // pred_fallthru
      _
    // Predicated region
    $region6: #{tpu_custom_call.1} parent=1 // pred_check
      _
    $region7: #{tpu_custom_call.1} parent=1 // pred_check_branch
      %21 = sbr.rel (0) target = $region9
    $region8: #{tpu_custom_call.1} parent=1 // pred_region
      %s23 = ssub.s32 32, 32
      %24 = vsyncadd [#allocation6], %s23
      %s26 = sshll.u32 [#allocation5], 4
      %s27 = int_to_ptr.vmem [resolvable:$true] %s26
      %29 = dma.hbm_to_vmem [thread:$0]  %s1, 32, %s27, [#allocation6]
    $region9: #{tpu_custom_call.1} parent=1 // pred_fallthru
      _
    // Predicated region
    $region10: #{tpu_custom_call.1} parent=1 // pred_check
      _
    $region11: #{tpu_custom_call.1} parent=1 // pred_check_branch
      %31 = sbr.rel (0) target = $region13
    $region12: #{tpu_custom_call.1} parent=1 // pred_region
      %32 = dma.done [#allocation3], 64
    $region13: #{tpu_custom_call.1} parent=1 // pred_fallthru
      _
    // Predicated region
    $region14: #{tpu_custom_call.1} parent=1 // pred_check
      _
    $region15: #{tpu_custom_call.1} parent=1 // pred_check_branch
      %34 = sbr.rel (0) target = $region17
    $region16: #{tpu_custom_call.1} parent=1 // pred_region
      %35 = dma.done [#allocation6], 32
    $region17: #{tpu_custom_call.1} parent=1 // pred_fallthru
      _
    %v36 = vld [vmem:[#allocation2] sm:$0xf]
    %v37 = vld [vmem:[#allocation5] sm:$0x3]
    %v39 = vlaneseq
    %v40 = vshrl.u32 %v39, 7
    %v41 = vsub.s32 0, %v40
    %v42 = vrot.slane %v37, %v41
    %v43 = vlaneseq
    %v44 = vshrl.u32 %v43, 7
    %v45 = vsub.s32 1, %v44
    %v46 = vrot.slane %v37, %v45
    %v47 = vcombine.low %v42, %v46
    %v49 = vunpack.c.l.s4 1983009808
    %v50 = vunpack.c.0.s8 %v49
    %v51 = vlaneseq
    %v52 = vshrl.u32 %v51, 7
    %v53 = vsub.s32 %v50, %v52
    %v54 = vrot.slane %v47, %v53
    %v56 = vadd.f32 %v36, %v54
    %57 = vst [vmem:[#allocation7] sm:$0xf] %v56
    // Predicated region
    $region18: #{tpu_custom_call.1} parent=1 // pred_check
      _
    $region19: #{tpu_custom_call.1} parent=1 // pred_check_branch
      %59 = sbr.rel (0) target = $region21
    $region20: #{tpu_custom_call.1} parent=1 // pred_region
      %s61 = ssub.s32 64, 64
      %62 = vsyncadd [#allocation4], %s61
      %s64 = sshll.u32 [#allocation7], 4
      %s65 = int_to_ptr.vmem [resolvable:$true] %s64
      %67 = dma.vmem_to_hbm [thread:$0]  %s65, 64, %s2, [#allocation4]
    $region21: #{tpu_custom_call.1} parent=1 // pred_fallthru
      _
    // Predicated region
    $region22: #{tpu_custom_call.1} parent=1 // pred_check
      _
    $region23: #{tpu_custom_call.1} parent=1 // pred_check_branch
      %69 = sbr.rel (0) target = $region25
    $region24: #{tpu_custom_call.1} parent=1 // pred_region
      %70 = dma.done [#allocation4], 64
    $region25: #{tpu_custom_call.1} parent=1 // pred_fallthru
      _
    %71 = vsyncpa [#allocation3], 1
    %72 = vsyncpa [#allocation6], 1
    %73 = vsyncpa [#allocation4], 1

</llo_original>
